<compile_context>
chip_gen: v7x
topology: tpu7x:2x2x1
jax: 0.10.0
libtpu: 0.0.40
codegen_flags: <defaults>
</compile_context>

<pallas_src>
import functools

import jax
import jax.numpy as jnp
from jax.experimental import pallas as pl
from jax.experimental.pallas import tpu as pltpu


def _nonneg(x, kind):
    if kind == "square":
        return x * x
    if kind == "abs":
        return jnp.abs(x)
    if kind == "exp":
        return jnp.exp(x)
    if kind == "relu":
        return jnp.maximum(x, 0.0)
    if kind == "sigmoid":
        return jax.nn.sigmoid(x)
    if kind == "softplus":
        return jax.nn.softplus(x)
    raise ValueError("unknown non-negativity transformation")


def _normalized_integral_kernel(x_ref, m_ref, tri_ref, o_ref, *, nonneg):
    x = x_ref[...].astype(jnp.float32)          # [BB, T]
    m = m_ref[...].astype(jnp.float32)          # [BB, T]

    gamma = _nonneg(x, nonneg)
    dgamma = m * gamma                          # [BB, T]

    # cumsum along T as a triangular matmul on the MXU:
    #   cs[b, t] = sum_{1 <= s <= t} dgamma[b, s]
    # tri has its first row AND first column zeroed, which folds in the
    # reference's m[:, 0] = 0 (no contribution from t=0, and out[:, 0] == 0).
    cs = jnp.dot(dgamma, tri_ref[...], preferred_element_type=jnp.float32)
    gamma = cs * m                              # [BB, T]

    gmax = jnp.max(gamma, axis=1, keepdims=True)              # [BB, 1]
    gmax = jnp.where(gmax == 0.0, 1.0, gmax)                  # gmax[gmax==0] = 1

    # Reciprocal of the [BB, 1] column (EUP) + one vmul, instead of a
    # broadcast f32 divide over [BB, T].
    inv = pl.reciprocal(gmax, approx=False)
    o_ref[...] = (gamma * inv).astype(o_ref.dtype)


def _round_up(x, m):
    return ((x + m - 1) // m) * m


def normalized_integral(input_seq, mask, *, nonneg="square", batch_tile_cap=256):
    """input_seq: [B, T] float32, mask: [B, 1, T] float32 -> [B, T] float32."""
    B, T = input_seq.shape
    mask2d = jnp.squeeze(mask, axis=1)           # glue: torch's mask.squeeze(1)

    # Triangular cumsum operand, built once outside the kernel.
    #   tri[s, t] = 1  iff  1 <= s <= t
    # Row 0 zeroed  -> position 0 never contributes (dgamma[:, 0] effect of m[:,0]=0).
    # Column 0 is automatically zero -> out[:, 0] == 0, as in the reference.
    r = jax.lax.broadcasted_iota(jnp.int32, (T, T), 0)
    c = jax.lax.broadcasted_iota(jnp.int32, (T, T), 1)
    tri = ((r <= c) & (r > 0)).astype(jnp.float32)            # [T, T]

    # Batch tile: multiple of 8 (f32 sublane rule), capped so VMEM stays
    # bounded (~3 * 2 * BB*T*4 B for double-buffered tiles + T*T*4 B for the
    # resident tri) and large batches get a multi-step, pipelined grid.
    # (On v5e a cap of 128 also works; 256 is tuned for v6e/v7x MXU.)
    BB = min(batch_tile_cap, _round_up(B, 8))
    B_pad = _round_up(B, BB)
    x_p, m_p = input_seq, mask2d
    if B_pad != B:
        pad = ((0, B_pad - B), (0, 0))
        x_p = jnp.pad(input_seq, pad)            # padded rows compute zeros,
        m_p = jnp.pad(mask2d, pad)               # sliced off below.

    grid = (B_pad // BB,)
    kernel = functools.partial(_normalized_integral_kernel, nonneg=nonneg)

    out = pl.pallas_call(
        kernel,
        out_shape=jax.ShapeDtypeStruct((B_pad, T), input_seq.dtype),
        grid_spec=pltpu.PrefetchScalarGridSpec(
            num_scalar_prefetch=0,
            grid=grid,
            in_specs=[
                pl.BlockSpec((BB, T), lambda i: (i, 0)),
                pl.BlockSpec((BB, T), lambda i: (i, 0)),
                # Constant block index => DMA'd once, VMEM-resident across steps.
                pl.BlockSpec((T, T), lambda i: (0, 0)),
            ],
            out_specs=pl.BlockSpec((BB, T), lambda i: (i, 0)),
        ),
        compiler_params=pltpu.CompilerParams(
            dimension_semantics=("parallel",),   # lets v7x shard batch tiles across TCs
        ),
    )(x_p, m_p, tri)

    return out[:B] if B_pad != B else out


def _reference(input_seq, mask, nonneg="square"):
    gamma = _nonneg(input_seq.astype(jnp.float32), nonneg)
    m = jnp.squeeze(mask, axis=1).astype(jnp.float32)
    mask_mask = jnp.ones_like(gamma).at[:, 0].set(0.0)
    m = m * mask_mask
    dgamma = m * gamma
    gamma = jnp.cumsum(dgamma, axis=-1) * m
    gmax = jnp.max(gamma, axis=1, keepdims=True)
    gmax = jnp.where(gmax == 0.0, 1.0, gmax)
    return gamma / gmax


if __name__ == "__main__":
    key = jax.random.PRNGKey(0)
    k1, k2 = jax.random.split(key)

    B, T = 2, 128
    input_seq = jax.random.normal(k1, (B, T), dtype=jnp.float32)
    # binary mask of shape [B, 1, T] (e.g. valid-length mask)
    mask = (jax.random.uniform(k2, (B, 1, T)) > 0.2).astype(jnp.float32)

    out = normalized_integral(input_seq, mask, nonneg="square")
    out = jax.block_until_ready(out)

    ref = _reference(input_seq, mask, nonneg="square")
    assert out.shape == (B, T)
    assert jnp.allclose(out, ref, atol=1e-5, rtol=1e-5), "mismatch vs reference"

    print("KERNEL_OK")
</pallas_src>

<mosaic_0001>
module attributes {stable_mosaic.version = 11 : i64} {
  func.func @_normalized_integral_kernel(%arg0: i32, %arg1: memref<8x128xf32, #tpu.memory_space<vmem>>, %arg2: memref<8x128xf32, #tpu.memory_space<vmem>>, %arg3: memref<128x128xf32, #tpu.memory_space<vmem>>, %arg4: memref<8x128xf32, #tpu.memory_space<vmem>>) attributes {dimension_semantics = [#tpu.dimension_semantics<parallel>], iteration_bounds = array<i64: 1>, scalar_prefetch = 0 : i64, scratch_operands = 0 : i64, tpu.core_type = #tpu.core_type<tc>, window_params = [{transform_indices = @transform_0, window_bounds = array<i64: 8, 128>}, {transform_indices = @transform_1, window_bounds = array<i64: 8, 128>}, {pipeline_mode = #tpu.pipeline_mode<synchronous>, transform_indices = @transform_2, window_bounds = array<i64: 128, 128>}, {transform_indices = @transform_3, window_bounds = array<i64: 8, 128>}]} {
    %c0 = arith.constant 0 : index
    %c0_0 = arith.constant 0 : index
    %0 = vector.load %arg1[%c0, %c0_0] : memref<8x128xf32, #tpu.memory_space<vmem>>, vector<8x128xf32>
    %c0_1 = arith.constant 0 : index
    %c0_2 = arith.constant 0 : index
    %1 = vector.load %arg2[%c0_1, %c0_2] : memref<8x128xf32, #tpu.memory_space<vmem>>, vector<8x128xf32>
    %2 = arith.mulf %0, %0 : vector<8x128xf32>
    %3 = arith.mulf %1, %2 : vector<8x128xf32>
    %c0_3 = arith.constant 0 : index
    %c0_4 = arith.constant 0 : index
    %4 = vector.load %arg3[%c0_3, %c0_4] : memref<128x128xf32, #tpu.memory_space<vmem>>, vector<128x128xf32>
    %cst = arith.constant dense<0.000000e+00> : vector<8x128xf32>
    %5 = tpu.matmul %3, %4, %cst {dimension_numbers = #tpu.dot_dimension_numbers<[1], [0], [0], [1], [0, 0, 1, 1], [], []>} : vector<8x128xf32>, vector<128x128xf32>, vector<8x128xf32> -> vector<8x128xf32>
    %6 = arith.mulf %5, %1 : vector<8x128xf32>
    %cst_5 = arith.constant dense<0xFF800000> : vector<8xf32>
    %7 = vector.multi_reduction <maximumf>, %6, %cst_5 [1] : vector<8x128xf32> to vector<8xf32>
    %8 = vector.shape_cast %7 : vector<8xf32> to vector<8x1xf32>
    %cst_6 = arith.constant 0.000000e+00 : f32
    %9 = vector.broadcast %cst_6 : f32 to vector<8x1xf32>
    %10 = arith.cmpf oeq, %8, %9 : vector<8x1xf32>
    %cst_7 = arith.constant 1.000000e+00 : f32
    %11 = vector.broadcast %cst_7 : f32 to vector<8x1xf32>
    %12 = arith.select %10, %11, %8 : vector<8x1xi1>, vector<8x1xf32>
    %13 = tpu.reciprocal %12 : vector<8x1xf32> -> vector<8x1xf32>
    %14 = vector.broadcast %13 : vector<8x1xf32> to vector<8x128xf32>
    %15 = arith.mulf %6, %14 : vector<8x128xf32>
    %c0_8 = arith.constant 0 : index
    %c0_9 = arith.constant 0 : index
    %16 = vector.load %arg4[%c0_8, %c0_9] : memref<8x128xf32, #tpu.memory_space<vmem>>, vector<8x128xf32>
    tpu.vector_store %arg4[%c0_8, %c0_9], %15 {strides = array<i32>} : memref<8x128xf32, #tpu.memory_space<vmem>>, vector<8x128xf32>,
    return
  }
  func.func @transform_0(%arg0: i32) -> (i32, i32) {
    %c0_i32 = arith.constant 0 : i32
    %c0_i32_0 = arith.constant 0 : i32
    return %arg0, %c0_i32 : i32, i32
  }
  func.func @transform_1(%arg0: i32) -> (i32, i32) {
    %c0_i32 = arith.constant 0 : i32
    %c0_i32_0 = arith.constant 0 : i32
    return %arg0, %c0_i32 : i32, i32
  }
  func.func @transform_2(%arg0: i32) -> (i32, i32) {
    %c0_i32 = arith.constant 0 : i32
    %c0_i32_0 = arith.constant 0 : i32
    %c0_i32_1 = arith.constant 0 : i32
    return %c0_i32, %c0_i32_0 : i32, i32
  }
  func.func @transform_3(%arg0: i32) -> (i32, i32) {
    %c0_i32 = arith.constant 0 : i32
    %c0_i32_0 = arith.constant 0 : i32
    return %arg0, %c0_i32 : i32, i32
  }
}

</mosaic_0001>

<llo_original>
// kernel: tpu_custom_call.1
$region0: #{tpu_custom_call.1}
  #allocation0 [shape = 'u32[]', space=smem, size = 0x4, offset = 0x4, fixed_abs, tag = 'smem constant byte address 0x4 - core index']
  #allocation1 [shape = 'u32[144,128]{1,0:T(1,128)}', space=vmem, size = 0x12000, scoped, tag = 'internal scratch']
  %s0 = inlined_call_operand.hbm [shape: f32[8,128], index: 0, kind: input, shape index: {}]
  %s1 = inlined_call_operand.hbm [shape: f32[8,128], index: 1, kind: input, shape index: {}]
  %s2 = inlined_call_operand.hbm [shape: f32[128,128], index: 2, kind: input, shape index: {}]
  %s3 = inlined_call_operand.hbm [shape: f32[8,128], index: 3, kind: output, shape index: {}]
  %s4 = sld [smem:[#allocation0]]
  $region34: #{tpu_custom_call.1} parent=0
    _
  %s6 = ssub.s32 1, %s4
  %s7 = scalar_select 0, %s6, %s4
  $region1: #{tpu_custom_call.1} parent=0
    #allocation2 [shape = 'u8[4096]{0}', space=vmem, size = 0x1000, scoped, tag = 'input window, operand 0, single buffered']
    #allocation3 [shape = 's32[1]{0}', space=sflag, size = 0x4, scoped, tag = 'scoped memory for tpu_custom_call.1']
    #allocation4 [shape = 's32[1]{0}', space=sflag, size = 0x4, scoped, tag = 'scoped memory for tpu_custom_call.1']
    #allocation5 [shape = 'u8[4096]{0}', space=vmem, size = 0x1000, scoped, tag = 'input window, operand 1, single buffered']
    #allocation6 [shape = 's32[1]{0}', space=sflag, size = 0x4, scoped, tag = 'scoped memory for tpu_custom_call.1']
    #allocation7 [shape = 'u8[65536]{0}', space=vmem, size = 0x10000, scoped, tag = 'input window, operand 2, single buffered']
    #allocation8 [shape = 'u8[4096]{0}', space=vmem, size = 0x1000, scoped, tag = 'output window, operand 0, single buffered']
    %8 = vsyncpa [#allocation3], 0
    %9 = vsyncpa [#allocation6], 0
    %10 = vsyncpa [#allocation4], 0
    // Predicated region
    $region2: #{tpu_custom_call.1} parent=1 // pred_check
      _
    $region3: #{tpu_custom_call.1} parent=1 // pred_check_branch
      %12 = sbr.rel (0) target = $region5
    $region4: #{tpu_custom_call.1} parent=1 // pred_region
      %s14 = ssub.s32 128, 128
      %15 = vsyncadd [#allocation3], %s14
      %s17 = sshll.u32 [#allocation2], 4
      %s18 = int_to_ptr.vmem [resolvable:$true] %s17
      %20 = dma.hbm_to_vmem [thread:$0]  %s0, 128, %s18, [#allocation3]
    $region5: #{tpu_custom_call.1} parent=1 // pred_fallthru
      _
    // Predicated region
    $region6: #{tpu_custom_call.1} parent=1 // pred_check
      _
    $region7: #{tpu_custom_call.1} parent=1 // pred_check_branch
      %22 = sbr.rel (0) target = $region9
    $region8: #{tpu_custom_call.1} parent=1 // pred_region
      %s24 = ssub.s32 128, 128
      %25 = vsyncadd [#allocation6], %s24
      %s27 = sshll.u32 [#allocation5], 4
      %s28 = int_to_ptr.vmem [resolvable:$true] %s27
      %30 = dma.hbm_to_vmem [thread:$0]  %s1, 128, %s28, [#allocation6]
    $region9: #{tpu_custom_call.1} parent=1 // pred_fallthru
      _
    // Predicated region
    $region10: #{tpu_custom_call.1} parent=1 // pred_check
      _
    $region11: #{tpu_custom_call.1} parent=1 // pred_check_branch
      %32 = sbr.rel (0) target = $region13
    $region12: #{tpu_custom_call.1} parent=1 // pred_region
      %s34 = ssub.s32 2048, 2048
      %35 = vsyncadd [#allocation6], %s34
      %s36 = sshll.u32 [#allocation7], 4
      %s37 = int_to_ptr.vmem [resolvable:$true] %s36
      %42 = dma.hbm_to_vmem [thread:$0]  %s2, 2048, %s37, [#allocation6], 128, 128, 8
    $region13: #{tpu_custom_call.1} parent=1 // pred_fallthru
      _
    // Predicated region
    $region14: #{tpu_custom_call.1} parent=1 // pred_check
      _
    $region15: #{tpu_custom_call.1} parent=1 // pred_check_branch
      %44 = sbr.rel (0) target = $region17
    $region16: #{tpu_custom_call.1} parent=1 // pred_region
      %45 = dma.done [#allocation3], 128
    $region17: #{tpu_custom_call.1} parent=1 // pred_fallthru
      _
    // Predicated region
    $region18: #{tpu_custom_call.1} parent=1 // pred_check
      _
    $region19: #{tpu_custom_call.1} parent=1 // pred_check_branch
      %47 = sbr.rel (0) target = $region21
    $region20: #{tpu_custom_call.1} parent=1 // pred_region
      %48 = dma.done [#allocation6], 128
    $region21: #{tpu_custom_call.1} parent=1 // pred_fallthru
      _
    // Predicated region
    $region22: #{tpu_custom_call.1} parent=1 // pred_check
      _
    $region23: #{tpu_custom_call.1} parent=1 // pred_check_branch
      %50 = sbr.rel (0) target = $region25
    $region24: #{tpu_custom_call.1} parent=1 // pred_region
      %51 = dma.done [#allocation6], 2048
    $region25: #{tpu_custom_call.1} parent=1 // pred_fallthru
      _
    %v52 = vld [vmem:[#allocation2] sm:$0xff]
    %v53 = vld [vmem:[#allocation5] sm:$0xff]
    %v54 = vmul.f32 %v52, %v52
    %v55 = vmul.f32 %v53, %v54
    %v56 = vld [vmem:[#allocation7] sm:$0xff]
    %v57 = vld [vmem:[#allocation7 + $0x8] sm:$0xff]
    %v58 = vld [vmem:[#allocation7 + $0x10] sm:$0xff]
    %v59 = vld [vmem:[#allocation7 + $0x18] sm:$0xff]
    %v60 = vld [vmem:[#allocation7 + $0x20] sm:$0xff]
    %v61 = vld [vmem:[#allocation7 + $0x28] sm:$0xff]
    %v62 = vld [vmem:[#allocation7 + $0x30] sm:$0xff]
    %v63 = vld [vmem:[#allocation7 + $0x38] sm:$0xff]
    %v64 = vld [vmem:[#allocation7 + $0x40] sm:$0xff]
    %v65 = vld [vmem:[#allocation7 + $0x48] sm:$0xff]
    %v66 = vld [vmem:[#allocation7 + $0x50] sm:$0xff]
    %v67 = vld [vmem:[#allocation7 + $0x58] sm:$0xff]
    %v68 = vld [vmem:[#allocation7 + $0x60] sm:$0xff]
    %v69 = vld [vmem:[#allocation7 + $0x68] sm:$0xff]
    %v70 = vld [vmem:[#allocation7 + $0x70] sm:$0xff]
    %v71 = vld [vmem:[#allocation7 + $0x78] sm:$0xff]
    %72 = vmatprep.subr.mxu0 0.0
    %73 = vmatpush1.msra.mxu0 %v56
    %74 = vmatprep.subr.mxu0 0.0
    %75 = vmatpush1.msra.mxu0 %v57
    %76 = vmatprep.subr.mxu0 0.0
    %77 = vmatpush1.msra.mxu0 %v58
    %78 = vmatprep.subr.mxu0 0.0
    %79 = vmatpush1.msra.mxu0 %v59
    %80 = vmatprep.subr.mxu0 0.0
    %81 = vmatpush1.msra.mxu0 %v60
    %82 = vmatprep.subr.mxu0 0.0
    %83 = vmatpush1.msra.mxu0 %v61
    %84 = vmatprep.subr.mxu0 0.0
    %85 = vmatpush1.msra.mxu0 %v62
    %86 = vmatprep.subr.mxu0 0.0
    %87 = vmatpush1.msra.mxu0 %v63
    %88 = vmatprep.subr.mxu0 0.0
    %89 = vmatpush1.msra.mxu0 %v64
    %90 = vmatprep.subr.mxu0 0.0
    %91 = vmatpush1.msra.mxu0 %v65
    %92 = vmatprep.subr.mxu0 0.0
    %93 = vmatpush1.msra.mxu0 %v66
    %94 = vmatprep.subr.mxu0 0.0
    %95 = vmatpush1.msra.mxu0 %v67
    %96 = vmatprep.subr.mxu0 0.0
    %97 = vmatpush1.msra.mxu0 %v68
    %98 = vmatprep.subr.mxu0 0.0
    %99 = vmatpush1.msra.mxu0 %v69
    %100 = vmatprep.subr.mxu0 0.0
    %101 = vmatpush1.msra.mxu0 %v70
    %102 = vmatprep.subr.mxu0 0.0
    %103 = vmatpush1.msra.mxu0 %v71
    %104 = vmatprep.subr.mxu0 0.0
    %105 = vmatpush1.msra.mxu0 0.0
    %106 = vmatprep.subr.mxu0 0.0
    %107 = vmatpush1.msra.mxu0 0.0
    %108 = vmatprep.subr.mxu0 0.0
    %109 = vmatpush1.msra.mxu0 0.0
    %110 = vmatprep.subr.mxu0 0.0
    %111 = vmatpush1.msra.mxu0 0.0
    %112 = vmatprep.subr.mxu0 0.0
    %113 = vmatpush1.msra.mxu0 0.0
    %114 = vmatprep.subr.mxu0 0.0
    %115 = vmatpush1.msra.mxu0 0.0
    %116 = vmatprep.subr.mxu0 0.0
    %117 = vmatpush1.msra.mxu0 0.0
    %118 = vmatprep.subr.mxu0 0.0
    %119 = vmatpush1.msra.mxu0 0.0
    %120 = vmatprep.subr.mxu0 0.0
    %121 = vmatpush1.msra.mxu0 0.0
    %122 = vmatprep.subr.mxu0 0.0
    %123 = vmatpush1.msra.mxu0 0.0
    %124 = vmatprep.subr.mxu0 0.0
    %125 = vmatpush1.msra.mxu0 0.0
    %126 = vmatprep.subr.mxu0 0.0
    %127 = vmatpush1.msra.mxu0 0.0
    %128 = vmatprep.subr.mxu0 0.0
    %129 = vmatpush1.msra.mxu0 0.0
    %130 = vmatprep.subr.mxu0 0.0
    %131 = vmatpush1.msra.mxu0 0.0
    %132 = vmatprep.subr.mxu0 0.0
    %133 = vmatpush1.msra.mxu0 0.0
    %134 = vmatprep.subr.mxu0 0.0
    %135 = vmatpush1.msra.mxu0 0.0
    %136 = vmatprep.mubr.f32.mxu0 0.0
    %137 = vmatmul.mubr.f32.gmra.mrb[0].mxu0 %v55
    %v138 = vpop.f32.mrb[0].mxu0
    %v139 = vadd.f32 0.0, %v138
    %v140 = vpop.f32.mrb[0].mxu0
    %141 = vdwg.mxu0
    %v142 = vmul.f32 %v139, %v53
    %143 = vmax.xlane.f32.xlu0 %v142
    %v144 = vpop.xlane.xlu0 %143
    %vm145 = vcmp.eq.f32.partialorder %v144, 0.0
    %v146 = vsel %vm145, 1.0, %v144
    %v147 = vrcp.pop %v146
    %v148 = vmul.f32 %v142, %v147
    %149 = vst [vmem:[#allocation8] sm:$0xff] %v148
    // Predicated region
    $region26: #{tpu_custom_call.1} parent=1 // pred_check
      _
    $region27: #{tpu_custom_call.1} parent=1 // pred_check_branch
      %151 = sbr.rel (0) target = $region29
    $region28: #{tpu_custom_call.1} parent=1 // pred_region
      %s153 = ssub.s32 128, 128
      %154 = vsyncadd [#allocation4], %s153
      %s156 = sshll.u32 [#allocation8], 4
      %s157 = int_to_ptr.vmem [resolvable:$true] %s156
      %159 = dma.vmem_to_hbm [thread:$0]  %s157, 128, %s3, [#allocation4]
    $region29: #{tpu_custom_call.1} parent=1 // pred_fallthru
      _
    // Predicated region
    $region30: #{tpu_custom_call.1} parent=1 // pred_check
      _
    $region31: #{tpu_custom_call.1} parent=1 // pred_check_branch
      %161 = sbr.rel (0) target = $region33
    $region32: #{tpu_custom_call.1} parent=1 // pred_region
      %162 = dma.done [#allocation4], 128
    $region33: #{tpu_custom_call.1} parent=1 // pred_fallthru
      _
    %163 = vsyncpa [#allocation3], 1
    %164 = vsyncpa [#allocation6], 1
    %165 = vsyncpa [#allocation4], 1

</llo_original>
